<compile_context>
chip_gen: v6e
topology: v6e:2x2x1
jax: 0.10.0
libtpu: 0.0.40
codegen_flags: <defaults>
</compile_context>

<pallas_src>
import functools

import jax
import jax.numpy as jnp
from jax import lax
from jax.experimental import pallas as pl
from jax.experimental.pallas import tpu as pltpu


def _round_up(x, m):
    return ((x + m - 1) // m) * m


def _make_kernel(tk, rem_k):
    """Fused  acc += A_tile @ (X_tile @ W^T)  kernel.

    rem_k > 0 means the last reduction block of A is partial: its in-block
    columns >= rem_k are out-of-bounds garbage and must be zeroed before the
    dot.  X is zero-padded in the wrapper, so the matching XW rows are exact
    zeros and contribute nothing.
    """

    def kernel(a_ref, x_ref, w_ref, o_ref, acc_ref):
        k = pl.program_id(1)
        nk = pl.num_programs(1)

        @pl.when(k == 0)
        def _():
            acc_ref[...] = jnp.zeros_like(acc_ref)

        a = a_ref[...]
        if rem_k:  # static Python branch: only emitted when N % tk != 0
            col = lax.broadcasted_iota(jnp.int32, a.shape, 1)
            limit = jnp.where(k == nk - 1, jnp.int32(rem_k), jnp.int32(tk))
            a = jnp.where(col < limit, a, jnp.zeros_like(a))
        a = a.astype(jnp.bfloat16)

        # (tk, Cpad) slice of XW = X @ W^T, recomputed on the fly (W resident,
        # nn.Linear (out, in) layout -> contract on dim 1 of both operands, no
        # transpose materialized).
        xw = lax.dot_general(
            x_ref[...], w_ref[...],
            dimension_numbers=(((1,), (1,)), ((), ())),
            preferred_element_type=jnp.float32).astype(jnp.bfloat16)

        acc_ref[...] += jnp.dot(a, xw, preferred_element_type=jnp.float32)

        @pl.when(k == nk - 1)
        def _():
            o_ref[...] = acc_ref[...].astype(o_ref.dtype)

    return kernel


@functools.partial(jax.jit, static_argnames=("tm_max", "tk_max"))
def gcn_layer_forward(A, X, W, *, tm_max=512, tk_max=1024):
    """A: (N, N), X: (N, Fin), W: (C, Fin)  (nn.Linear weight layout)."""
    N = A.shape[0]
    Fin = X.shape[1]
    C = W.shape[0]

    LANE = 128
    Cpad = _round_up(C, LANE)        # lane-dense output / feature dim

    # Row tile of A / output: full extent when small (always a legal block
    # shape), otherwise a 512-row tile (multiple of 8/128).
    tm = N if N <= tm_max else tm_max
    # Reduction tile (lane dim of A, row dim of X): full extent when small,
    # otherwise 1024 (multiple of 128).
    tk = N if N <= tk_max else tk_max

    n_i = pl.cdiv(N, tm)
    n_k = pl.cdiv(N, tk)
    rem_k = N % tk                   # 0 unless N > tk_max and not a multiple

    # X is tiny (N x Fin): zero-pad its rows to a multiple of tk so the padded
    # XW rows are exact zeros.  A itself is never copied or padded.
    Nk_pad = n_k * tk
    Xb = X.astype(jnp.bfloat16)
    if Nk_pad != N:
        Xb = jnp.zeros((Nk_pad, Fin), jnp.bfloat16).at[:N, :].set(Xb)

    Wb = W.astype(jnp.bfloat16)
    if Cpad != C:
        Wb = jnp.zeros((Cpad, Fin), jnp.bfloat16).at[:C, :].set(Wb)

    kernel = _make_kernel(tk, rem_k)
    a_bytes = A.dtype.itemsize

    y = pl.pallas_call(
        kernel,
        out_shape=jax.ShapeDtypeStruct((N, Cpad), jnp.float32),
        grid_spec=pltpu.PrefetchScalarGridSpec(
            num_scalar_prefetch=0,
            grid=(n_i, n_k),                                  # k innermost
            in_specs=[
                pl.BlockSpec((tm, tk), lambda i, k: (i, k)),      # streamed A
                pl.BlockSpec((tk, Fin), lambda i, k: (k, 0)),     # streamed X
                pl.BlockSpec((Cpad, Fin), lambda i, k: (0, 0)),   # resident W
            ],
            out_specs=pl.BlockSpec((tm, Cpad), lambda i, k: (i, 0)),
            scratch_shapes=[pltpu.VMEM((tm, Cpad), jnp.float32)],
        ),
        compiler_params=pltpu.CompilerParams(
            dimension_semantics=("parallel", "arbitrary"),
            vmem_limit_bytes=32 * 1024 * 1024),
        cost_estimate=pl.CostEstimate(
            flops=2 * N * N * Cpad + 2 * n_i * Nk_pad * Fin * Cpad,
            transcendentals=0,
            bytes_accessed=(a_bytes * N * N            # A read once (f32)
                            + 2 * n_i * Nk_pad * Fin   # X re-read per row tile
                            + 2 * Cpad * Fin           # W read once
                            + 4 * N * Cpad)),          # output write
    )(A, Xb, Wb)

    return y[:, :C] if Cpad != C else y


# --------------------------------------------------------------------------
# References
# --------------------------------------------------------------------------
def gcn_reference_f32(A, X, W):
    return A @ (X @ W.T)


def gcn_reference_bf16(A, X, W):
    # Same bf16 rounding points as the kernel (operands bf16, f32 accumulate).
    xw = jnp.dot(X.astype(jnp.bfloat16), W.T.astype(jnp.bfloat16),
                 preferred_element_type=jnp.float32).astype(jnp.bfloat16)
    return jnp.dot(A.astype(jnp.bfloat16), xw,
                   preferred_element_type=jnp.float32)


def _make_inputs(key, N, Fin, C):
    k_a, k_x, k_w = jax.random.split(key, 3)
    # Symmetric, row-normalized adjacency with self loops (deterministic).
    A_raw = (jax.random.uniform(k_a, (N, N)) > 0.7).astype(jnp.float32)
    A = A_raw + A_raw.T + jnp.eye(N, dtype=jnp.float32)
    A = A / jnp.maximum(A.sum(axis=1, keepdims=True), 1.0)
    X = jax.random.normal(k_x, (N, Fin), dtype=jnp.float32)
    # nn.Linear(in, out, bias=False): weight (out, in), uniform(+-1/sqrt(in)).
    bound = 1.0 / jnp.sqrt(Fin)
    W = jax.random.uniform(k_w, (C, Fin), minval=-bound, maxval=bound,
                           dtype=jnp.float32)
    return A, X, W


if __name__ == "__main__":
    key = jax.random.PRNGKey(0)
    k1, k2 = jax.random.split(key)

    # ---- Test 1: shapes matching the module spec (single-tile fast path) ----
    N, Fin, C = 64, 16, 32
    A, X, W = _make_inputs(k1, N, Fin, C)

    out = gcn_layer_forward(A, X, W)
    out = jax.block_until_ready(out)
    assert out.shape == (N, C)

    ref_bf16 = gcn_reference_bf16(A, X, W)
    assert jnp.allclose(out, ref_bf16, atol=2e-2, rtol=2e-2), \
        "mismatch vs bf16 reference (test 1)"
    ref_f32 = gcn_reference_f32(A, X, W)
    assert jnp.allclose(out, ref_f32, atol=5e-2, rtol=5e-2), \
        "mismatch vs f32 reference (test 1)"

    # ---- Test 2: exercise multi-block grid, partial edge blocks and the ----
    # ---- in-kernel reduction-column masking path with small forced tiles ----
    N2, Fin2, C2 = 200, 48, 96
    A2, X2, W2 = _make_inputs(k2, N2, Fin2, C2)

    out2 = gcn_layer_forward(A2, X2, W2, tm_max=128, tk_max=128)
    out2 = jax.block_until_ready(out2)
    assert out2.shape == (N2, C2)

    ref2_bf16 = gcn_reference_bf16(A2, X2, W2)
    assert jnp.allclose(out2, ref2_bf16, atol=2e-2, rtol=2e-2), \
        "mismatch vs bf16 reference (test 2)"
    ref2_f32 = gcn_reference_f32(A2, X2, W2)
    assert jnp.allclose(out2, ref2_f32, atol=5e-2, rtol=5e-2), \
        "mismatch vs f32 reference (test 2)"

    print("KERNEL_OK")
</pallas_src>

<mosaic_0001>
module attributes {stable_mosaic.version = 11 : i64} {
  func.func @kernel(%arg0: i32, %arg1: i32, %arg2: memref<64x64xf32, #tpu.memory_space<vmem>>, %arg3: memref<64x16xbf16, #tpu.memory_space<vmem>>, %arg4: memref<128x16xbf16, #tpu.memory_space<vmem>>, %arg5: memref<64x128xf32, #tpu.memory_space<vmem>>, %arg6: memref<64x128xf32, #tpu.memory_space<vmem>>) attributes {dimension_semantics = [#tpu.dimension_semantics<parallel>, #tpu.dimension_semantics<arbitrary>], iteration_bounds = array<i64: 1, 1>, scalar_prefetch = 0 : i64, scratch_operands = 1 : i64, tpu.core_type = #tpu.core_type<tc>, window_params = [{transform_indices = @transform_0, window_bounds = array<i64: 64, 64>}, {transform_indices = @transform_1, window_bounds = array<i64: 64, 16>}, {pipeline_mode = #tpu.pipeline_mode<synchronous>, transform_indices = @transform_2, window_bounds = array<i64: 128, 16>}, {transform_indices = @transform_3, window_bounds = array<i64: 64, 128>}]} {
    %c0_i32 = arith.constant 0 : i32
    %0 = arith.cmpi eq, %arg1, %c0_i32 : i32
    %1 = arith.extui %0 : i1 to i32
    %c0_i32_0 = arith.constant 0 : i32
    %2 = arith.cmpi ne, %1, %c0_i32_0 : i32
    scf.if %2 {
      %cst_13 = arith.constant 0.000000e+00 : f32
      %16 = vector.broadcast %cst_13 : f32 to vector<64x128xf32>
      %c0_14 = arith.constant 0 : index
      %c0_15 = arith.constant 0 : index
      %17 = vector.load %arg6[%c0_14, %c0_15] : memref<64x128xf32, #tpu.memory_space<vmem>>, vector<64x128xf32>
      tpu.vector_store %arg6[%c0_14, %c0_15], %16 {strides = array<i32>} : memref<64x128xf32, #tpu.memory_space<vmem>>, vector<64x128xf32>,
    } else {
    }
    %c0 = arith.constant 0 : index
    %c0_1 = arith.constant 0 : index
    %3 = vector.load %arg2[%c0, %c0_1] : memref<64x64xf32, #tpu.memory_space<vmem>>, vector<64x64xf32>
    %4 = arith.truncf %3 : vector<64x64xf32> to vector<64x64xbf16>
    %c0_2 = arith.constant 0 : index
    %c0_3 = arith.constant 0 : index
    %5 = vector.load %arg3[%c0_2, %c0_3] : memref<64x16xbf16, #tpu.memory_space<vmem>>, vector<64x16xbf16>
    %c0_4 = arith.constant 0 : index
    %c0_5 = arith.constant 0 : index
    %6 = vector.load %arg4[%c0_4, %c0_5] : memref<128x16xbf16, #tpu.memory_space<vmem>>, vector<128x16xbf16>
    %cst = arith.constant dense<0.000000e+00> : vector<64x128xf32>
    %7 = tpu.matmul %5, %6, %cst {dimension_numbers = #tpu.dot_dimension_numbers<[1], [1], [0], [0], [0, 0, 1, 0], [], []>} : vector<64x16xbf16>, vector<128x16xbf16>, vector<64x128xf32> -> vector<64x128xf32>
    %8 = arith.truncf %7 : vector<64x128xf32> to vector<64x128xbf16>
    %c0_6 = arith.constant 0 : index
    %c0_7 = arith.constant 0 : index
    %9 = vector.load %arg6[%c0_6, %c0_7] : memref<64x128xf32, #tpu.memory_space<vmem>>, vector<64x128xf32>
    %cst_8 = arith.constant dense<0.000000e+00> : vector<64x128xf32>
    %10 = tpu.matmul %4, %8, %cst_8 {dimension_numbers = #tpu.dot_dimension_numbers<[1], [0], [0], [1], [0, 0, 1, 1], [], []>} : vector<64x64xbf16>, vector<64x128xbf16>, vector<64x128xf32> -> vector<64x128xf32>
    %11 = arith.addf %9, %10 : vector<64x128xf32>
    %c0_9 = arith.constant 0 : index
    %c0_10 = arith.constant 0 : index
    %12 = vector.load %arg6[%c0_9, %c0_10] : memref<64x128xf32, #tpu.memory_space<vmem>>, vector<64x128xf32>
    tpu.vector_store %arg6[%c0_9, %c0_10], %11 {strides = array<i32>} : memref<64x128xf32, #tpu.memory_space<vmem>>, vector<64x128xf32>,
    %c0_i32_11 = arith.constant 0 : i32
    %13 = arith.cmpi eq, %arg1, %c0_i32_11 : i32
    %14 = arith.extui %13 : i1 to i32
    %c0_i32_12 = arith.constant 0 : i32
    %15 = arith.cmpi ne, %14, %c0_i32_12 : i32
    scf.if %15 {
      %c0_13 = arith.constant 0 : index
      %c0_14 = arith.constant 0 : index
      %16 = vector.load %arg6[%c0_13, %c0_14] : memref<64x128xf32, #tpu.memory_space<vmem>>, vector<64x128xf32>
      %c0_15 = arith.constant 0 : index
      %c0_16 = arith.constant 0 : index
      %17 = vector.load %arg5[%c0_15, %c0_16] : memref<64x128xf32, #tpu.memory_space<vmem>>, vector<64x128xf32>
      tpu.vector_store %arg5[%c0_15, %c0_16], %16 {strides = array<i32>} : memref<64x128xf32, #tpu.memory_space<vmem>>, vector<64x128xf32>,
    } else {
    }
    return
  }
  func.func @transform_0(%arg0: i32, %arg1: i32) -> (i32, i32) {
    %c0_i32 = arith.constant 0 : i32
    return %arg0, %arg1 : i32, i32
  }
  func.func @transform_1(%arg0: i32, %arg1: i32) -> (i32, i32) {
    %c0_i32 = arith.constant 0 : i32
    %c0_i32_0 = arith.constant 0 : i32
    return %arg1, %c0_i32 : i32, i32
  }
  func.func @transform_2(%arg0: i32, %arg1: i32) -> (i32, i32) {
    %c0_i32 = arith.constant 0 : i32
    %c0_i32_0 = arith.constant 0 : i32
    %c0_i32_1 = arith.constant 0 : i32
    return %c0_i32, %c0_i32_0 : i32, i32
  }
  func.func @transform_3(%arg0: i32, %arg1: i32) -> (i32, i32) {
    %c0_i32 = arith.constant 0 : i32
    %c0_i32_0 = arith.constant 0 : i32
    return %arg0, %c0_i32 : i32, i32
  }
}

</mosaic_0001>

<llo_original>
// kernel: gcn_layer_forward.1
$region0: #{gcn_layer_forward.1}
  #allocation0 [shape = 'u32[]', space=smem, size = 0x4, offset = 0x4, fixed_abs, tag = 'smem constant byte address 0x4 - core index']
  #allocation1 [shape = 'u32[144,128]{1,0:T(1,128)}', space=vmem, size = 0x12000, scoped, tag = 'internal scratch']
  #allocation2 [shape = 'f32[64,128]{1,0:T(8,128)}', space=vmem, size = 0x8000, scoped, tag = 'scratch operand']
  %s0 = inlined_call_operand.vmem [shape: f32[64,64], index: 0, kind: input, shape index: {}]
  %s1 = inlined_call_operand.vmem [shape: bf16[64,16], index: 1, kind: input, shape index: {}]
  %s2 = inlined_call_operand.vmem [shape: bf16[128,16], index: 2, kind: input, shape index: {}]
  %s3 = inlined_call_operand.vmem [shape: f32[64,128], index: 3, kind: output, shape index: {}]
  %s4 = sld [smem:[#allocation0]]
  $region30: #{gcn_layer_forward.1} parent=0
    _
  %s6 = ssub.s32 1, %s4
  %s7 = scalar_select 0, %s6, %s4
  // Predicated region
  $region2: #{gcn_layer_forward.1} parent=0 // pred_check
    _
  $region3: #{gcn_layer_forward.1} parent=0 // pred_check_branch
    %9 = sbr.rel (0) target = $region5
  $region4: #{gcn_layer_forward.1} parent=0 // pred_region
    _
  $region5: #{gcn_layer_forward.1} parent=0 // pred_fallthru
    _
  // Predicated region
  $region6: #{gcn_layer_forward.1} parent=0 // pred_check
    _
  $region7: #{gcn_layer_forward.1} parent=0 // pred_check_branch
    %11 = sbr.rel (0) target = $region9
  $region8: #{gcn_layer_forward.1} parent=0 // pred_region
    _
  $region9: #{gcn_layer_forward.1} parent=0 // pred_fallthru
    _
  // Predicated region
  $region10: #{gcn_layer_forward.1} parent=0 // pred_check
    _
  $region11: #{gcn_layer_forward.1} parent=0 // pred_check_branch
    %13 = sbr.rel (0) target = $region13
  $region12: #{gcn_layer_forward.1} parent=0 // pred_region
    _
  $region13: #{gcn_layer_forward.1} parent=0 // pred_fallthru
    _
  %p15 = scmp.eq.s32.totalorder 0, 0
  // Predicated region
  $region14: #{gcn_layer_forward.1} parent=0 // pred_check
    %p16 = pneg %p15
  $region15: #{gcn_layer_forward.1} parent=0 // pred_check_branch
    %18 = sbr.rel (%p16) target = $region17
  $region16: #{gcn_layer_forward.1} parent=0 // pred_region
    %19 = vst [vmem:[#allocation2] sm:$0xff] 0.0
    %20 = vst [vmem:[#allocation2 + $0x8] sm:$0xff] 0.0
    %21 = vst [vmem:[#allocation2 + $0x10] sm:$0xff] 0.0
    %22 = vst [vmem:[#allocation2 + $0x18] sm:$0xff] 0.0
    %23 = vst [vmem:[#allocation2 + $0x20] sm:$0xff] 0.0
    %24 = vst [vmem:[#allocation2 + $0x28] sm:$0xff] 0.0
    %25 = vst [vmem:[#allocation2 + $0x30] sm:$0xff] 0.0
    %26 = vst [vmem:[#allocation2 + $0x38] sm:$0xff] 0.0
  $region17: #{gcn_layer_forward.1} parent=0 // pred_fallthru
    _
  %v27 = vld [vmem:[%s0] sm:$0xff]
  %v28 = vld [vmem:[%s0 + $0x8] sm:$0xff]
  %v29 = vld [vmem:[%s0 + $0x10] sm:$0xff]
  %v30 = vld [vmem:[%s0 + $0x18] sm:$0xff]
  %v31 = vld [vmem:[%s0 + $0x20] sm:$0xff]
  %v32 = vld [vmem:[%s0 + $0x28] sm:$0xff]
  %v33 = vld [vmem:[%s0 + $0x30] sm:$0xff]
  %v34 = vld [vmem:[%s0 + $0x38] sm:$0xff]
  %v35 = vpack.c.bf16 %v28, %v27
  %v36 = vpack.c.bf16 %v30, %v29
  %v37 = vpack.c.bf16 %v32, %v31
  %v38 = vpack.c.bf16 %v34, %v33
  %v39 = vld [vmem:[%s1] sm:$0xf]
  %v40 = vld [vmem:[%s1 + $0x4] sm:$0xf]
  %v41 = vld [vmem:[%s1 + $0x8] sm:$0xf]
  %v42 = vld [vmem:[%s1 + $0xc] sm:$0xf]
  %v43 = vld [vmem:[%s1 + $0x10] sm:$0xf]
  %v44 = vld [vmem:[%s1 + $0x14] sm:$0xf]
  %v45 = vld [vmem:[%s1 + $0x18] sm:$0xf]
  %v46 = vld [vmem:[%s1 + $0x1c] sm:$0xf]
  %v47 = vld [vmem:[%s2] sm:$0xf]
  %v48 = vld [vmem:[%s2 + $0x4] sm:$0xf]
  %v49 = vld [vmem:[%s2 + $0x8] sm:$0xf]
  %v50 = vld [vmem:[%s2 + $0xc] sm:$0xf]
  %v51 = vld [vmem:[%s2 + $0x10] sm:$0xf]
  %v52 = vld [vmem:[%s2 + $0x14] sm:$0xf]
  %v53 = vld [vmem:[%s2 + $0x18] sm:$0xf]
  %v54 = vld [vmem:[%s2 + $0x1c] sm:$0xf]
  %v55 = vld [vmem:[%s2 + $0x20] sm:$0xf]
  %v56 = vld [vmem:[%s2 + $0x24] sm:$0xf]
  %v57 = vld [vmem:[%s2 + $0x28] sm:$0xf]
  %v58 = vld [vmem:[%s2 + $0x2c] sm:$0xf]
  %v59 = vld [vmem:[%s2 + $0x30] sm:$0xf]
  %v60 = vld [vmem:[%s2 + $0x34] sm:$0xf]
  %v61 = vld [vmem:[%s2 + $0x38] sm:$0xf]
  %v62 = vld [vmem:[%s2 + $0x3c] sm:$0xf]
  %v71 = vunpack.c.l.b16 %v39
  %v72 = vunpack.c.l.b16 %v40
  %v73 = vunpack.c.l.b16 %v41
  %v74 = vunpack.c.l.b16 %v42
  %v75 = vunpack.c.l.b16 %v43
  %v76 = vunpack.c.l.b16 %v44
  %v77 = vunpack.c.l.b16 %v45
  %v78 = vunpack.c.l.b16 %v46
  %v79 = vpack.c.b16 %v72, %v71
  %v80 = vpack.c.b16 %v74, %v73
  %v81 = vpack.c.b16 %v76, %v75
  %v82 = vpack.c.b16 %v78, %v77
  %v99 = vunpack.c.l.b16 %v47
  %v100 = vunpack.c.l.b16 %v48
  %v101 = vunpack.c.l.b16 %v49
  %v102 = vunpack.c.l.b16 %v50
  %v103 = vunpack.c.l.b16 %v51
  %v104 = vunpack.c.l.b16 %v52
  %v105 = vunpack.c.l.b16 %v53
  %v106 = vunpack.c.l.b16 %v54
  %v107 = vunpack.c.l.b16 %v55
  %v108 = vunpack.c.l.b16 %v56
  %v109 = vunpack.c.l.b16 %v57
  %v110 = vunpack.c.l.b16 %v58
  %v111 = vunpack.c.l.b16 %v59
  %v112 = vunpack.c.l.b16 %v60
  %v113 = vunpack.c.l.b16 %v61
  %v114 = vunpack.c.l.b16 %v62
  %v115 = vpack.c.b16 %v100, %v99
  %v116 = vpack.c.b16 %v102, %v101
  %v117 = vpack.c.b16 %v104, %v103
  %v118 = vpack.c.b16 %v106, %v105
  %v119 = vpack.c.b16 %v108, %v107
  %v120 = vpack.c.b16 %v110, %v109
  %v121 = vpack.c.b16 %v112, %v111
  %v122 = vpack.c.b16 %v114, %v113
  %vm123 = vcmask 130048
  %v125 = vsel %vm123, %v79, 0
  %v128 = vsel %vm123, %v80, 0
  %v131 = vsel %vm123, %v81, 0
  %v134 = vsel %vm123, %v82, 0
  %v137 = vsel %vm123, %v115, 0
  %v140 = vsel %vm123, %v116, 0
  %v143 = vsel %vm123, %v117, 0
  %v146 = vsel %vm123, %v118, 0
  %v149 = vsel %vm123, %v119, 0
  %v152 = vsel %vm123, %v120, 0
  %v155 = vsel %vm123, %v121, 0
  %v158 = vsel %vm123, %v122, 0
  %160 = vmatprep.subr.bf16.mxu0 0
  %161 = vmatpush1.bf16.xpose.msra.mxu0 %v158
  %162 = vmatprep.subr.bf16.mxu0 0
  %163 = vmatpush1.bf16.xpose.msra.mxu0 %v155
  %164 = vmatprep.subr.bf16.mxu0 0
  %165 = vmatpush1.bf16.xpose.msra.mxu0 %v152
  %166 = vmatprep.subr.bf16.mxu0 0
  %167 = vmatpush1.bf16.xpose.msra.mxu0 %v149
  %168 = vmatprep.subr.bf16.mxu0 0
  %169 = vmatpush1.bf16.xpose.msra.mxu0 %v146
  %170 = vmatprep.subr.bf16.mxu0 0
  %171 = vmatpush1.bf16.xpose.msra.mxu0 %v143
  %172 = vmatprep.subr.bf16.mxu0 0
  %173 = vmatpush1.bf16.xpose.msra.mxu0 %v140
  %174 = vmatprep.subr.bf16.mxu0 0
  %175 = vmatpush1.bf16.xpose.msra.mxu0 %v137
  %176 = vmatprep.subr.bf16.mxu0 0
  %177 = vmatpush2.bf16.xpose.msra.mxu0 0
  %178 = vmatprep.subr.bf16.mxu0 0
  %179 = vmatpush2.bf16.xpose.msra.mxu0 0
  %180 = vmatprep.subr.bf16.mxu0 0
  %181 = vmatpush2.bf16.xpose.msra.mxu0 0
  %182 = vmatprep.subr.bf16.mxu0 0
  %183 = vmatpush2.bf16.xpose.msra.mxu0 0
  %184 = vmatprep.subr.bf16.mxu0 0
  %185 = vmatpush2.bf16.xpose.msra.mxu0 0
  %186 = vmatprep.subr.bf16.mxu0 0
  %187 = vmatpush2.bf16.xpose.msra.mxu0 0
  %188 = vmatprep.subr.bf16.mxu0 0
  %189 = vmatpush2.bf16.xpose.msra.mxu0 0
  %190 = vmatprep.subr.bf16.mxu0 0
  %191 = vmatpush2.bf16.xpose.msra.mxu0 0
  %192 = vmatprep.mubr.bf16.mxu0 0
  %193 = vmatmul.mubr.bf16.gmra.mxu0 %v125
  %v194 = vpop.f32.mrf.mxu0
  %v195 = vadd.f32 0.0, %v194
  %v196 = vpop.f32.mrf.mxu0
  %v197 = vpop.f32.mrf.mxu0
  %v198 = vadd.f32 0.0, %v197
  %v199 = vpop.f32.mrf.mxu0
  %200 = vmatprep.mubr.bf16.mxu0 0
  %201 = vmatmul.mubr.bf16.gmra.mxu0 %v128
  %v202 = vpop.f32.mrf.mxu0
  %v203 = vadd.f32 0.0, %v202
  %v204 = vpop.f32.mrf.mxu0
  %v205 = vpop.f32.mrf.mxu0
  %v206 = vadd.f32 0.0, %v205
  %v207 = vpop.f32.mrf.mxu0
  %208 = vmatprep.mubr.bf16.mxu0 0
  %209 = vmatmul.mubr.bf16.gmra.mxu0 %v131
  %v210 = vpop.f32.mrf.mxu0
  %v211 = vadd.f32 0.0, %v210
  %v212 = vpop.f32.mrf.mxu0
  %v213 = vpop.f32.mrf.mxu0
  %v214 = vadd.f32 0.0, %v213
  %v215 = vpop.f32.mrf.mxu0
  %216 = vmatprep.mubr.bf16.mxu0 0
  %217 = vmatmul.mubr.bf16.gmra.mxu0 %v134
  %v218 = vpop.f32.mrf.mxu0
  %v219 = vadd.f32 0.0, %v218
  %v220 = vpop.f32.mrf.mxu0
  %v221 = vpop.f32.mrf.mxu0
  %v222 = vadd.f32 0.0, %v221
  %v223 = vpop.f32.mrf.mxu0
  %224 = vdwg.mxu0
  %v225 = vpack.c.bf16 %v198, %v195
  %v226 = vpack.c.bf16 %v206, %v203
  %v227 = vpack.c.bf16 %v214, %v211
  %v228 = vpack.c.bf16 %v222, %v219
  %v229 = vld [vmem:[#allocation2] sm:$0xff]
  %v230 = vld [vmem:[#allocation2 + $0x8] sm:$0xff]
  %v231 = vld [vmem:[#allocation2 + $0x10] sm:$0xff]
  %v232 = vld [vmem:[#allocation2 + $0x18] sm:$0xff]
  %v233 = vld [vmem:[#allocation2 + $0x20] sm:$0xff]
  %v234 = vld [vmem:[#allocation2 + $0x28] sm:$0xff]
  %v235 = vld [vmem:[#allocation2 + $0x30] sm:$0xff]
  %v236 = vld [vmem:[#allocation2 + $0x38] sm:$0xff]
  %vm237 = vcmask 523264
  %v239 = vsel %vm237, %v35, 0
  %v242 = vsel %vm237, %v36, 0
  %v245 = vsel %vm237, %v37, 0
  %v248 = vsel %vm237, %v38, 0
  %250 = vmatprep.subr.bf16.mxu0 0
  %251 = vmatpush1.bf16.msra.mxu0 0
  %252 = vmatprep.subr.bf16.mxu0 0
  %253 = vmatpush1.bf16.msra.mxu0 0
  %254 = vmatprep.subr.bf16.mxu0 0
  %255 = vmatpush1.bf16.msra.mxu0 0
  %256 = vmatprep.subr.bf16.mxu0 0
  %257 = vmatpush1.bf16.msra.mxu0 0
  %258 = vmatprep.subr.bf16.mxu0 0
  %259 = vmatpush1.bf16.msra.mxu0 %v228
  %260 = vmatprep.subr.bf16.mxu0 0
  %261 = vmatpush1.bf16.msra.mxu0 %v227
  %262 = vmatprep.subr.bf16.mxu0 0
  %263 = vmatpush1.bf16.msra.mxu0 %v226
  %264 = vmatprep.subr.bf16.mxu0 0
  %265 = vmatpush1.bf16.msra.mxu0 %v225
  %266 = vmatprep.subr.bf16.mxu0 0
  %267 = vmatpush2.bf16.msra.mxu0 0
  %268 = vmatprep.subr.bf16.mxu0 0
  %269 = vmatpush2.bf16.msra.mxu0 0
  %270 = vmatprep.subr.bf16.mxu0 0
  %271 = vmatpush2.bf16.msra.mxu0 0
  %272 = vmatprep.subr.bf16.mxu0 0
  %273 = vmatpush2.bf16.msra.mxu0 0
  %274 = vmatprep.subr.bf16.mxu0 0
  %275 = vmatpush2.bf16.msra.mxu0 0
  %276 = vmatprep.subr.bf16.mxu0 0
  %277 = vmatpush2.bf16.msra.mxu0 0
  %278 = vmatprep.subr.bf16.mxu0 0
  %279 = vmatpush2.bf16.msra.mxu0 0
  %280 = vmatprep.subr.bf16.mxu0 0
  %281 = vmatpush2.bf16.msra.mxu0 0
  %282 = vmatprep.mubr.bf16.mxu0 0
  %283 = vmatmul.mubr.bf16.gmra.mxu0 %v239
  %v284 = vpop.f32.mrf.mxu0
  %v285 = vadd.f32 0.0, %v284
  %v286 = vpop.f32.mrf.mxu0
  %v287 = vpop.f32.mrf.mxu0
  %v288 = vadd.f32 0.0, %v287
  %v289 = vpop.f32.mrf.mxu0
  %290 = vmatprep.mubr.bf16.mxu0 0
  %291 = vmatmul.mubr.bf16.gmra.mxu0 %v242
  %v292 = vpop.f32.mrf.mxu0
  %v293 = vadd.f32 0.0, %v292
  %v294 = vpop.f32.mrf.mxu0
  %v295 = vpop.f32.mrf.mxu0
  %v296 = vadd.f32 0.0, %v295
  %v297 = vpop.f32.mrf.mxu0
  %298 = vmatprep.mubr.bf16.mxu0 0
  %299 = vmatmul.mubr.bf16.gmra.mxu0 %v245
  %v300 = vpop.f32.mrf.mxu0
  %v301 = vadd.f32 0.0, %v300
  %v302 = vpop.f32.mrf.mxu0
  %v303 = vpop.f32.mrf.mxu0
  %v304 = vadd.f32 0.0, %v303
  %v305 = vpop.f32.mrf.mxu0
  %306 = vmatprep.mubr.bf16.mxu0 0
  %307 = vmatmul.mubr.bf16.gmra.mxu0 %v248
  %v308 = vpop.f32.mrf.mxu0
  %v309 = vadd.f32 0.0, %v308
  %v310 = vpop.f32.mrf.mxu0
  %v311 = vpop.f32.mrf.mxu0
  %v312 = vadd.f32 0.0, %v311
  %v313 = vpop.f32.mrf.mxu0
  %314 = vdwg.mxu0
  %v315 = vadd.f32 %v229, %v285
  %v316 = vadd.f32 %v230, %v288
  %v317 = vadd.f32 %v231, %v293
  %v318 = vadd.f32 %v232, %v296
  %v319 = vadd.f32 %v233, %v301
  %v320 = vadd.f32 %v234, %v304
  %v321 = vadd.f32 %v235, %v309
  %v322 = vadd.f32 %v236, %v312
  %323 = vst [vmem:[#allocation2] sm:$0xff] %v315
  %324 = vst [vmem:[#allocation2 + $0x8] sm:$0xff] %v316
  %325 = vst [vmem:[#allocation2 + $0x10] sm:$0xff] %v317
  %326 = vst [vmem:[#allocation2 + $0x18] sm:$0xff] %v318
  %327 = vst [vmem:[#allocation2 + $0x20] sm:$0xff] %v319
  %328 = vst [vmem:[#allocation2 + $0x28] sm:$0xff] %v320
  %329 = vst [vmem:[#allocation2 + $0x30] sm:$0xff] %v321
  %330 = vst [vmem:[#allocation2 + $0x38] sm:$0xff] %v322
  // Predicated region
  $region18: #{gcn_layer_forward.1} parent=0 // pred_check
    %p331 = pneg %p15
  $region19: #{gcn_layer_forward.1} parent=0 // pred_check_branch
    %333 = sbr.rel (%p331) target = $region21
  $region20: #{gcn_layer_forward.1} parent=0 // pred_region
    %v334 = vld [vmem:[#allocation2] sm:$0xff]
    %v335 = vld [vmem:[#allocation2 + $0x8] sm:$0xff]
    %v336 = vld [vmem:[#allocation2 + $0x10] sm:$0xff]
    %v337 = vld [vmem:[#allocation2 + $0x18] sm:$0xff]
    %v338 = vld [vmem:[#allocation2 + $0x20] sm:$0xff]
    %v339 = vld [vmem:[#allocation2 + $0x28] sm:$0xff]
    %v340 = vld [vmem:[#allocation2 + $0x30] sm:$0xff]
    %v341 = vld [vmem:[#allocation2 + $0x38] sm:$0xff]
    %342 = vst [vmem:[%s3] sm:$0xff] %v334
    %343 = vst [vmem:[%s3 + $0x8] sm:$0xff] %v335
    %344 = vst [vmem:[%s3 + $0x10] sm:$0xff] %v336
    %345 = vst [vmem:[%s3 + $0x18] sm:$0xff] %v337
    %346 = vst [vmem:[%s3 + $0x20] sm:$0xff] %v338
    %347 = vst [vmem:[%s3 + $0x28] sm:$0xff] %v339
    %348 = vst [vmem:[%s3 + $0x30] sm:$0xff] %v340
    %349 = vst [vmem:[%s3 + $0x38] sm:$0xff] %v341
  $region21: #{gcn_layer_forward.1} parent=0 // pred_fallthru
    _
  // Predicated region
  $region22: #{gcn_layer_forward.1} parent=0 // pred_check
    _
  $region23: #{gcn_layer_forward.1} parent=0 // pred_check_branch
    %351 = sbr.rel (0) target = $region25
  $region24: #{gcn_layer_forward.1} parent=0 // pred_region
    _
  $region25: #{gcn_layer_forward.1} parent=0 // pred_fallthru
    _
  // Predicated region
  $region26: #{gcn_layer_forward.1} parent=0 // pred_check
    _
  $region27: #{gcn_layer_forward.1} parent=0 // pred_check_branch
    %353 = sbr.rel (0) target = $region29
  $region28: #{gcn_layer_forward.1} parent=0 // pred_region
    _
  $region29: #{gcn_layer_forward.1} parent=0 // pred_fallthru
    _

</llo_original>
